<compile_context>
chip_gen: v6e
topology: v6e:2x2x1
jax: 0.10.0
libtpu: 0.0.40
codegen_flags: <defaults>
</compile_context>

<pallas_src>
import functools

import jax
import jax.numpy as jnp
from jax import lax
from jax.experimental import pallas as pl
from jax.experimental.pallas import tpu as pltpu


def channel_attention_kernel(x_ref, w1_ref, w2_ref, o_ref, sum_ref, max_ref,
                             *, inv_hw):
    # x_ref:   (n_blk, C, hw_blk) VMEM tile of the flattened-spatial input
    # w1_ref:  (hidden, C)  fc1 weight (PyTorch (out, in) layout), resident
    # w2_ref:  (C, hidden)  fc2 weight, resident
    # o_ref:   (n_blk, C)   output tile (same block across the hw axis)
    # sum_ref, max_ref: (n_blk, C) f32 VMEM scratch accumulators
    hw_step = pl.program_id(1)
    n_hw = pl.num_programs(1)

    @pl.when(hw_step == 0)
    def _init():
        sum_ref[...] = jnp.zeros_like(sum_ref)
        max_ref[...] = jnp.full_like(max_ref, -jnp.inf)

    n_blk, c_dim, hw_blk = x_ref.shape

    # Single-pass sweep over the tile: one chunk load feeds both reductions.
    if hw_blk % 512 == 0:
        chunk = 512
    elif hw_blk % 128 == 0:
        chunk = 128
    else:
        chunk = hw_blk
    n_chunks = hw_blk // chunk

    def body(ci, carry):
        s, m = carry
        xc = x_ref[:, :, pl.ds(ci * chunk, chunk)].astype(jnp.float32)
        return s + jnp.sum(xc, axis=-1), jnp.maximum(m, jnp.max(xc, axis=-1))

    s0 = jnp.zeros((n_blk, c_dim), jnp.float32)
    m0 = jnp.full((n_blk, c_dim), -jnp.inf, jnp.float32)
    s, m = lax.fori_loop(0, n_chunks, body, (s0, m0), unroll=True)

    sum_ref[...] += s
    max_ref[...] = jnp.maximum(max_ref[...], m)

    @pl.when(hw_step == n_hw - 1)
    def _finalize():
        avg = sum_ref[...] * inv_hw          # divide by full H*W only here
        mx = max_ref[...]

        # Fuse the two MLP passes: one (2*n_blk, C) operand through fc1->relu->fc2.
        pooled = jnp.concatenate([avg, mx], axis=0)

        # fc1: pooled @ w1^T without materializing a transpose.
        h = lax.dot_general(
            pooled, w1_ref[...],
            dimension_numbers=(((1,), (1,)), ((), ())),
            preferred_element_type=jnp.float32,
        )
        h = jnp.maximum(h, 0.0)

        # fc2: h @ w2^T without materializing a transpose.
        y = lax.dot_general(
            h, w2_ref[...],
            dimension_numbers=(((1,), (1,)), ((), ())),
            preferred_element_type=jnp.float32,
        )

        n = o_ref.shape[0]
        o_ref[...] = jax.nn.sigmoid(y[:n] + y[n:]).astype(o_ref.dtype)


def _pick_n_block(n):
    # Sublane-friendly N tile for the (n_blk, C) output block: a multiple of 8
    # if possible, otherwise the full N (both satisfy the (8,128) block rule).
    if n % 8 == 0:
        return min(n, 8)
    return n


def _pick_hw_block(hw, n_blk, c, itemsize, budget_bytes=3 * 1024 * 1024):
    # ~3 MiB per x tile => ~6 MiB double-buffered: fits v5e's 16 MiB scoped
    # VMEM default and is far under v7x's 64 MiB physical VMEM.
    if hw % 128 != 0:
        return hw  # odd spatial size: single full block (correct, just padded lanes)
    max_blk = max(128, budget_bytes // max(1, n_blk * c * itemsize))
    blk = min(hw, (max_blk // 128) * 128)
    blk = max(blk, 128)
    while hw % blk != 0:
        blk -= 128
    return blk


def channel_attention(x, w1, w2, *, n_block=None, hw_block=None):
    """x: (N, C, H, W); w1: (C//ratio, C) fc1 weight; w2: (C, C//ratio) fc2 weight.

    Returns (N, C, 1, 1), matching the PyTorch forward pass.
    """
    N, C, H, W = x.shape
    hw = H * W
    # Lane-dense slab: the flattened spatial axis maps onto 128-lane vregs.
    x_flat = x.reshape(N, C, hw)

    if n_block is None:
        n_block = _pick_n_block(N)
    assert N % n_block == 0, "n_block must divide N"

    if hw_block is None:
        hw_block = _pick_hw_block(hw, n_block, C, x.dtype.itemsize)
    assert hw % hw_block == 0, "hw_block must divide H*W (avoids padded garbage in max)"

    n_steps = N // n_block
    hw_steps = hw // hw_block
    inv_hw = 1.0 / float(hw)

    kernel = functools.partial(channel_attention_kernel, inv_hw=inv_hw)

    grid_spec = pltpu.PrefetchScalarGridSpec(
        num_scalar_prefetch=0,
        grid=(n_steps, hw_steps),  # reduction (hw) axis last
        in_specs=[
            pl.BlockSpec((n_block, C, hw_block), lambda n, k: (n, 0, k)),
            # Tiny weights: constant index_map -> DMA'd once, resident across steps.
            pl.BlockSpec(w1.shape, lambda n, k: (0, 0)),
            pl.BlockSpec(w2.shape, lambda n, k: (0, 0)),
        ],
        out_specs=pl.BlockSpec((n_block, C), lambda n, k: (n, 0)),
        scratch_shapes=[
            pltpu.VMEM((n_block, C), jnp.float32),  # running sum
            pltpu.VMEM((n_block, C), jnp.float32),  # running max
        ],
    )

    out_nc = pl.pallas_call(
        kernel,
        out_shape=jax.ShapeDtypeStruct((N, C), jnp.float32),
        grid_spec=grid_spec,
        compiler_params=pltpu.CompilerParams(
            dimension_semantics=("parallel", "arbitrary")),
    )(x_flat, w1, w2)

    # TODO(synk): for C >= 128 production configs the (n_blk, C) output block is
    # already lane-dense; for the toy C=32 case masked partial stores are accepted.
    return out_nc.reshape(N, C, 1, 1)


def channel_attention_ref(x, w1, w2):
    """Pure-JAX reference mirroring the PyTorch module."""
    avg = jnp.mean(x, axis=(2, 3))  # (N, C)
    mx = jnp.max(x, axis=(2, 3))    # (N, C)

    def mlp(v):
        h = jnp.maximum(v @ w1.T, 0.0)
        return h @ w2.T

    out = jax.nn.sigmoid(mlp(avg) + mlp(mx))
    return out.reshape(x.shape[0], x.shape[1], 1, 1)


if __name__ == "__main__":
    key = jax.random.PRNGKey(0)
    k_x, k_w1, k_w2 = jax.random.split(key, 3)

    # Small shapes consistent with the module: in_planes=32, ratio=8.
    N, C, H, W = 2, 32, 16, 16
    ratio = 8
    hidden = C // ratio  # 4

    x = jax.random.normal(k_x, (N, C, H, W), dtype=jnp.float32)
    # Deterministic "kaiming-ish" init for the 1x1 conv weights (no bias).
    w1 = jax.random.normal(k_w1, (hidden, C), dtype=jnp.float32) * (1.0 / jnp.sqrt(C))
    w2 = jax.random.normal(k_w2, (C, hidden), dtype=jnp.float32) * (1.0 / jnp.sqrt(hidden))

    # Force hw_block=128 so the toy run exercises the multi-step accumulator
    # path (H*W = 256 -> 2 "arbitrary" grid steps along the spatial axis).
    out = channel_attention(x, w1, w2, hw_block=128)
    out = jax.block_until_ready(out)

    ref = channel_attention_ref(x, w1, w2)
    assert out.shape == (N, C, 1, 1)
    assert jnp.allclose(out, ref, atol=1e-5, rtol=1e-5)

    print("KERNEL_OK")
</pallas_src>

<mosaic_0001>
module attributes {stable_mosaic.version = 11 : i64} {
  func.func @channel_attention_kernel(%arg0: i32, %arg1: i32, %arg2: memref<2x32x128xf32, #tpu.memory_space<vmem>>, %arg3: memref<4x32xf32, #tpu.memory_space<vmem>>, %arg4: memref<32x4xf32, #tpu.memory_space<vmem>>, %arg5: memref<2x32xf32, #tpu.memory_space<vmem>>, %arg6: memref<2x32xf32, #tpu.memory_space<vmem>>, %arg7: memref<2x32xf32, #tpu.memory_space<vmem>>) attributes {dimension_semantics = [#tpu.dimension_semantics<parallel>, #tpu.dimension_semantics<arbitrary>], iteration_bounds = array<i64: 1, 2>, scalar_prefetch = 0 : i64, scratch_operands = 2 : i64, tpu.core_type = #tpu.core_type<tc>, window_params = [{transform_indices = @transform_0, window_bounds = array<i64: 2, 32, 128>}, {pipeline_mode = #tpu.pipeline_mode<synchronous>, transform_indices = @transform_1, window_bounds = array<i64: 4, 32>}, {pipeline_mode = #tpu.pipeline_mode<synchronous>, transform_indices = @transform_2, window_bounds = array<i64: 32, 4>}, {transform_indices = @transform_3, window_bounds = array<i64: 2, 32>}]} {
    %c0_i32 = arith.constant 0 : i32
    %0 = arith.cmpi eq, %arg1, %c0_i32 : i32
    %1 = arith.extui %0 : i1 to i32
    %c0_i32_0 = arith.constant 0 : i32
    %2 = arith.cmpi ne, %1, %c0_i32_0 : i32
    scf.if %2 {
      %cst_16 = arith.constant 0.000000e+00 : f32
      %21 = vector.broadcast %cst_16 : f32 to vector<2x32xf32>
      %c0_17 = arith.constant 0 : index
      %c0_18 = arith.constant 0 : index
      %22 = vector.load %arg6[%c0_17, %c0_18] : memref<2x32xf32, #tpu.memory_space<vmem>>, vector<2x32xf32>
      tpu.vector_store %arg6[%c0_17, %c0_18], %21 {strides = array<i32>} : memref<2x32xf32, #tpu.memory_space<vmem>>, vector<2x32xf32>,
      %cst_19 = arith.constant 0xFF800000 : f32
      %23 = vector.broadcast %cst_19 : f32 to vector<2x32xf32>
      %c0_20 = arith.constant 0 : index
      %c0_21 = arith.constant 0 : index
      %24 = vector.load %arg7[%c0_20, %c0_21] : memref<2x32xf32, #tpu.memory_space<vmem>>, vector<2x32xf32>
      tpu.vector_store %arg7[%c0_20, %c0_21], %23 {strides = array<i32>} : memref<2x32xf32, #tpu.memory_space<vmem>>, vector<2x32xf32>,
    } else {
    }
    %cst = arith.constant 0.000000e+00 : f32
    %3 = vector.broadcast %cst : f32 to vector<2x32xf32>
    %cst_1 = arith.constant 0xFF800000 : f32
    %4 = vector.broadcast %cst_1 : f32 to vector<2x32xf32>
    %c0_i32_2 = arith.constant 0 : i32
    %c128_i32 = arith.constant 128 : i32
    %5 = arith.muli %c0_i32_2, %c128_i32 : i32
    %c0 = arith.constant 0 : index
    %c0_3 = arith.constant 0 : index
    %6 = arith.index_cast %5 : i32 to index
    %7 = vector.load %arg2[%c0, %c0_3, %6] : memref<2x32x128xf32, #tpu.memory_space<vmem>>, vector<2x32x128xf32>
    %cst_4 = arith.constant dense<0.000000e+00> : vector<2x32xf32>
    %8 = vector.multi_reduction <add>, %7, %cst_4 [2] : vector<2x32x128xf32> to vector<2x32xf32>
    %9 = arith.addf %3, %8 : vector<2x32xf32>
    %cst_5 = arith.constant dense<0xFF800000> : vector<2x32xf32>
    %10 = vector.multi_reduction <maximumf>, %7, %cst_5 [2] : vector<2x32x128xf32> to vector<2x32xf32>
    %11 = arith.maximumf %4, %10 : vector<2x32xf32>
    %c1_i32 = arith.constant 1 : i32
    %c0_6 = arith.constant 0 : index
    %c0_7 = arith.constant 0 : index
    %12 = vector.load %arg6[%c0_6, %c0_7] : memref<2x32xf32, #tpu.memory_space<vmem>>, vector<2x32xf32>
    %13 = arith.addf %12, %9 : vector<2x32xf32>
    %c0_8 = arith.constant 0 : index
    %c0_9 = arith.constant 0 : index
    %14 = vector.load %arg6[%c0_8, %c0_9] : memref<2x32xf32, #tpu.memory_space<vmem>>, vector<2x32xf32>
    tpu.vector_store %arg6[%c0_8, %c0_9], %13 {strides = array<i32>} : memref<2x32xf32, #tpu.memory_space<vmem>>, vector<2x32xf32>,
    %c0_10 = arith.constant 0 : index
    %c0_11 = arith.constant 0 : index
    %15 = vector.load %arg7[%c0_10, %c0_11] : memref<2x32xf32, #tpu.memory_space<vmem>>, vector<2x32xf32>
    %16 = arith.maximumf %15, %11 : vector<2x32xf32>
    %c0_12 = arith.constant 0 : index
    %c0_13 = arith.constant 0 : index
    %17 = vector.load %arg7[%c0_12, %c0_13] : memref<2x32xf32, #tpu.memory_space<vmem>>, vector<2x32xf32>
    tpu.vector_store %arg7[%c0_12, %c0_13], %16 {strides = array<i32>} : memref<2x32xf32, #tpu.memory_space<vmem>>, vector<2x32xf32>,
    %c1_i32_14 = arith.constant 1 : i32
    %18 = arith.cmpi eq, %arg1, %c1_i32_14 : i32
    %19 = arith.extui %18 : i1 to i32
    %c0_i32_15 = arith.constant 0 : i32
    %20 = arith.cmpi ne, %19, %c0_i32_15 : i32
    scf.if %20 {
      %c0_16 = arith.constant 0 : index
      %c0_17 = arith.constant 0 : index
      %21 = vector.load %arg6[%c0_16, %c0_17] : memref<2x32xf32, #tpu.memory_space<vmem>>, vector<2x32xf32>
      %cst_18 = arith.constant 3.906250e-03 : f32
      %22 = vector.broadcast %cst_18 : f32 to vector<2x32xf32>
      %23 = arith.mulf %21, %22 : vector<2x32xf32>
      %c0_19 = arith.constant 0 : index
      %c0_20 = arith.constant 0 : index
      %24 = vector.load %arg7[%c0_19, %c0_20] : memref<2x32xf32, #tpu.memory_space<vmem>>, vector<2x32xf32>
      %25 = tpu.concatenate %23, %24 in 0 : vector<2x32xf32>, vector<2x32xf32> -> vector<4x32xf32>
      %c0_21 = arith.constant 0 : index
      %c0_22 = arith.constant 0 : index
      %26 = vector.load %arg3[%c0_21, %c0_22] : memref<4x32xf32, #tpu.memory_space<vmem>>, vector<4x32xf32>
      %cst_23 = arith.constant dense<0.000000e+00> : vector<4x4xf32>
      %27 = tpu.matmul %25, %26, %cst_23 {dimension_numbers = #tpu.dot_dimension_numbers<[1], [1], [0], [0], [0, 0, 1, 0], [], []>} : vector<4x32xf32>, vector<4x32xf32>, vector<4x4xf32> -> vector<4x4xf32>
      %cst_24 = arith.constant 0.000000e+00 : f32
      %28 = vector.broadcast %cst_24 : f32 to vector<4x4xf32>
      %29 = arith.maximumf %27, %28 : vector<4x4xf32>
      %c0_25 = arith.constant 0 : index
      %c0_26 = arith.constant 0 : index
      %30 = vector.load %arg4[%c0_25, %c0_26] : memref<32x4xf32, #tpu.memory_space<vmem>>, vector<32x4xf32>
      %cst_27 = arith.constant dense<0.000000e+00> : vector<4x32xf32>
      %31 = tpu.matmul %29, %30, %cst_27 {dimension_numbers = #tpu.dot_dimension_numbers<[1], [1], [0], [0], [0, 0, 1, 0], [], []>} : vector<4x4xf32>, vector<32x4xf32>, vector<4x32xf32> -> vector<4x32xf32>
      %32 = vector.extract_strided_slice %31 {offsets = [0, 0], sizes = [2, 32], strides = [1, 1]} : vector<4x32xf32> to vector<2x32xf32>
      %33 = vector.extract_strided_slice %31 {offsets = [2, 0], sizes = [2, 32], strides = [1, 1]} : vector<4x32xf32> to vector<2x32xf32>
      %34 = arith.addf %32, %33 : vector<2x32xf32>
      %35 = arith.negf %34 : vector<2x32xf32>
      %36 = math.exp %35 : vector<2x32xf32>
      %cst_28 = arith.constant 1.000000e+00 : f32
      %37 = vector.broadcast %cst_28 : f32 to vector<2x32xf32>
      %38 = arith.addf %37, %36 : vector<2x32xf32>
      %39 = arith.divf %37, %38 : vector<2x32xf32>
      %c0_29 = arith.constant 0 : index
      %c0_30 = arith.constant 0 : index
      %40 = vector.load %arg5[%c0_29, %c0_30] : memref<2x32xf32, #tpu.memory_space<vmem>>, vector<2x32xf32>
      tpu.vector_store %arg5[%c0_29, %c0_30], %39 {strides = array<i32>} : memref<2x32xf32, #tpu.memory_space<vmem>>, vector<2x32xf32>,
    } else {
    }
    return
  }
  func.func @transform_0(%arg0: i32, %arg1: i32) -> (i32, i32, i32) {
    %c0_i32 = arith.constant 0 : i32
    %c0_i32_0 = arith.constant 0 : i32
    return %arg0, %c0_i32, %arg1 : i32, i32, i32
  }
  func.func @transform_1(%arg0: i32, %arg1: i32) -> (i32, i32) {
    %c0_i32 = arith.constant 0 : i32
    %c0_i32_0 = arith.constant 0 : i32
    %c0_i32_1 = arith.constant 0 : i32
    return %c0_i32, %c0_i32_0 : i32, i32
  }
  func.func @transform_2(%arg0: i32, %arg1: i32) -> (i32, i32) {
    %c0_i32 = arith.constant 0 : i32
    %c0_i32_0 = arith.constant 0 : i32
    %c0_i32_1 = arith.constant 0 : i32
    return %c0_i32, %c0_i32_0 : i32, i32
  }
  func.func @transform_3(%arg0: i32, %arg1: i32) -> (i32, i32) {
    %c0_i32 = arith.constant 0 : i32
    %c0_i32_0 = arith.constant 0 : i32
    return %arg0, %c0_i32 : i32, i32
  }
}

</mosaic_0001>

<llo_original>
// kernel: tpu_custom_call.1
$region0: #{tpu_custom_call.1}
  #allocation0 [shape = 'u32[]', space=smem, size = 0x4, offset = 0x4, fixed_abs, tag = 'smem constant byte address 0x4 - core index']
  #allocation1 [shape = 'u32[144,128]{1,0:T(1,128)}', space=vmem, size = 0x12000, scoped, tag = 'internal scratch']
  #allocation2 [shape = 'f32[2,32]{1,0:T(2,128)}', space=vmem, size = 0x400, scoped, tag = 'scratch operand']
  #allocation3 [shape = 'f32[2,32]{1,0:T(2,128)}', space=vmem, size = 0x400, scoped, tag = 'scratch operand']
  %s0 = inlined_call_operand.hbm [shape: f32[2,32,256], index: 0, kind: input, shape index: {}]
  %s1 = inlined_call_operand.vmem [shape: f32[4,32], index: 1, kind: input, shape index: {}]
  %s2 = inlined_call_operand.vmem [shape: f32[32,4], index: 2, kind: input, shape index: {}]
  %s3 = inlined_call_operand.hbm [shape: f32[2,32], index: 3, kind: output, shape index: {}]
  %s4 = sld [smem:[#allocation0]]
  $region57: #{tpu_custom_call.1} parent=0
    _
  %s6 = ssub.s32 1, %s4
  %s7 = scalar_select 0, %s6, %s4
  $region1: #{tpu_custom_call.1} parent=0
    #allocation4 [shape = 'u8[65536]{0}', space=vmem, size = 0x10000, scoped, tag = 'input window, operand 0']
    #allocation5 [shape = 's32[2]{0}', space=sflag, size = 0x8, scoped, tag = 'scoped memory for tpu_custom_call.1']
    #allocation6 [shape = 's32[2]{0}', space=sflag, size = 0x8, scoped, tag = 'scoped memory for tpu_custom_call.1']
    #allocation7 [shape = 'u8[1024]{0}', space=vmem, size = 0x400, scoped, tag = 'output window, operand 0, single buffered']
    %8 = vsyncpa [#allocation5], 0
    %s9 = scalar_lea.sflag [#allocation5], 1
    %10 = vsyncpa %s9, 0
    %11 = vsyncpa [#allocation6], 0
    loop: start=0, step=1, limit=4
    $region2: #{tpu_custom_call.1} parent=1 // loop_pre_header
      _
    $region3: #{tpu_custom_call.1} parent=1 // loop_header
      %s13 = sphi 0, %s17
      %p14 = scmp.ge.s32.totalorder %s13, 4
      %s20 = sphi 0, %s32
      %s21 = sphi 0, %s28
      %s22 = sphi 0, %s20
      %s23 = sphi 0, %s21
      %s24 = sphi 0, %s22
      %s25 = sphi 0, %s23
      %s37 = sphi 0, %s39
      %s40 = sphi 0, %s37
      %s41 = sphi 0, %s40
      %s57 = sphi 0, %s41
      %s61 = sphi 0, %s61
      %s63 = sphi 0, %s61
      %s64 = sphi 0, %s63
      %s78 = sphi 0, %s64
      %s82 = sphi 0, %s82
      %s84 = sphi 0, %s82
      %s85 = sphi 0, %s84
      %s99 = sphi 0, %s85
      %s105 = sphi 0, %s107
      %s108 = sphi 0, %s105
      %s109 = sphi 0, %s108
      %s125 = sphi 0, %s109
    $region4: #{tpu_custom_call.1} parent=1 // loop_header_branch
      %16 = sbr.rel (%p14) target = $region8
    $region5: #{tpu_custom_call.1} parent=1 // loop_body
      %s18 = ssub.s32 %s13, 1
      %s19 = ssub.s32 %s13, 2
      %s26 = sadd.s32 1, %s21
      %p27 = scmp.ge.s32.totalorder %s26, 2
      %s28 = scalar_select %p27, 0, %s26
      %s29 = sadd.s32 1, %s20
      %s30 = scalar_select %p27, %s29, %s20
      %p31 = scmp.ge.s32.totalorder %s30, 1
      %s32 = scalar_select %p31, 0, %s30
      %s33 = ssub.s32 %s20, %s32
      %s34 = ssub.s32 %s21, %s28
      %s35 = sor.u32 %s33, %s34
      %p36 = scmp.eq.s32.totalorder %s35, 0
      %s38 = sadd.s32 %s37, 1
      %s39 = scalar_select %p36, %s37, %s38
      %p42 = pneg %p36
      %p43 = scmp.eq.s32.totalorder %s13, 1
      %p44 = por %p42, %p43
      %p45 = scmp.ne.s32.totalorder %s37, %s40
      %p46 = scmp.eq.s32.totalorder %s13, 0
      %p47 = por %p45, %p46
      %p48 = scmp.ne.s32.totalorder %s37, %s40
      %p49 = scmp.eq.s32.totalorder %s18, 1
      %p50 = por %p48, %p49
      %p51 = scmp.ne.s32.totalorder %s40, %s41
      %p52 = scmp.eq.s32.totalorder %s18, 0
      %p53 = por %p51, %p52
      %p54 = scmp.ne.s32.totalorder %s40, %s41
      %p55 = scmp.eq.s32.totalorder %s19, 1
      %p56 = por %p54, %p55
      %p58 = scmp.ne.s32.totalorder %s41, %s57
      %p59 = scmp.eq.s32.totalorder %s19, 0
      %p60 = por %p58, %p59
      %s62 = sadd.s32 %s61, 1
      %p65 = scmp.eq.s32.totalorder %s13, 1
      %p66 = scmp.ne.s32.totalorder %s61, %s63
      %p67 = scmp.eq.s32.totalorder %s13, 0
      %p68 = por %p66, %p67
      %p69 = scmp.ne.s32.totalorder %s61, %s63
      %p70 = scmp.eq.s32.totalorder %s18, 1
      %p71 = por %p69, %p70
      %p72 = scmp.ne.s32.totalorder %s63, %s64
      %p73 = scmp.eq.s32.totalorder %s18, 0
      %p74 = por %p72, %p73
      %p75 = scmp.ne.s32.totalorder %s63, %s64
      %p76 = scmp.eq.s32.totalorder %s19, 1
      %p77 = por %p75, %p76
      %p79 = scmp.ne.s32.totalorder %s64, %s78
      %p80 = scmp.eq.s32.totalorder %s19, 0
      %p81 = por %p79, %p80
      %s83 = sadd.s32 %s82, 1
      %p86 = scmp.eq.s32.totalorder %s13, 1
      %p87 = scmp.ne.s32.totalorder %s82, %s84
      %p88 = scmp.eq.s32.totalorder %s13, 0
      %p89 = por %p87, %p88
      %p90 = scmp.ne.s32.totalorder %s82, %s84
      %p91 = scmp.eq.s32.totalorder %s18, 1
      %p92 = por %p90, %p91
      %p93 = scmp.ne.s32.totalorder %s84, %s85
      %p94 = scmp.eq.s32.totalorder %s18, 0
      %p95 = por %p93, %p94
      %p96 = scmp.ne.s32.totalorder %s84, %s85
      %p97 = scmp.eq.s32.totalorder %s19, 1
      %p98 = por %p96, %p97
      %p100 = scmp.ne.s32.totalorder %s85, %s99
      %p101 = scmp.eq.s32.totalorder %s19, 0
      %p102 = por %p100, %p101
      %s103 = ssub.s32 %s20, %s32
      %p104 = scmp.eq.s32.totalorder %s103, 0
      %s106 = sadd.s32 %s105, 1
      %s107 = scalar_select %p104, %s105, %s106
      %p110 = pneg %p104
      %p111 = scmp.eq.s32.totalorder %s13, 1
      %p112 = por %p110, %p111
      %p113 = scmp.ne.s32.totalorder %s105, %s108
      %p114 = scmp.eq.s32.totalorder %s13, 0
      %p115 = por %p113, %p114
      %p116 = scmp.ne.s32.totalorder %s105, %s108
      %p117 = scmp.eq.s32.totalorder %s18, 1
      %p118 = por %p116, %p117
      %p119 = scmp.ne.s32.totalorder %s108, %s109
      %p120 = scmp.eq.s32.totalorder %s18, 0
      %p121 = por %p119, %p120
      %p122 = scmp.ne.s32.totalorder %s108, %s109
      %p123 = scmp.eq.s32.totalorder %s19, 1
      %p124 = por %p122, %p123
      %p126 = scmp.ne.s32.totalorder %s109, %s125
      %p127 = scmp.eq.s32.totalorder %s19, 0
      %p128 = por %p126, %p127
      %p129 = scmp.le.s32.totalorder 1, %s13
      %p130 = scmp.lt.s32.totalorder %s13, 3
      %p131 = pnand %p129, %p130
      %p132 = pneg %p131
      // Predicated region
      $region9: #{tpu_custom_call.1} parent=5 // pred_check
        _
      $region10: #{tpu_custom_call.1} parent=5 // pred_check_branch
        %134 = sbr.rel (%p131) target = $region12
      $region11: #{tpu_custom_call.1} parent=5 // pred_region
        %s135 = ssub.s32 %s13, 1
        // Predicated region
        $region13: #{tpu_custom_call.1} parent=11 // pred_check
          %p136 = pneg %p74
        $region14: #{tpu_custom_call.1} parent=11 // pred_check_branch
          %138 = sbr.rel (%p136) target = $region16
        $region15: #{tpu_custom_call.1} parent=11 // pred_region
          _
        $region16: #{tpu_custom_call.1} parent=11 // pred_fallthru
          _
        // Predicated region
        $region17: #{tpu_custom_call.1} parent=11 // pred_check
          %p139 = pneg %p95
        $region18: #{tpu_custom_call.1} parent=11 // pred_check_branch
          %141 = sbr.rel (%p139) target = $region20
        $region19: #{tpu_custom_call.1} parent=11 // pred_region
          _
        $region20: #{tpu_custom_call.1} parent=11 // pred_fallthru
          _
      $region12: #{tpu_custom_call.1} parent=5 // pred_fallthru
        _
      %p142 = scmp.lt.s32.totalorder %s13, 2
      // Predicated region
      $region21: #{tpu_custom_call.1} parent=5 // pred_check
        %p143 = pneg %p142
      $region22: #{tpu_custom_call.1} parent=5 // pred_check_branch
        %145 = sbr.rel (%p143) target = $region24
      $region23: #{tpu_custom_call.1} parent=5 // pred_region
        // Predicated region
        $region25: #{tpu_custom_call.1} parent=23 // pred_check
          %p146 = pneg %p47
        $region26: #{tpu_custom_call.1} parent=23 // pred_check_branch
          %148 = sbr.rel (%p146) target = $region28
        $region27: #{tpu_custom_call.1} parent=23 // pred_region
          %s149 = sand.u32 %s37, 1
          %s150 = scalar_lea.sflag [#allocation5], %s149
          %s151 = sand.u32 %s37, 1
          %s152 = smul.addr %s151, 64
          %s153 = scalar_lea.vmem [#allocation4], %s152
          %s154 = smul.u32 2, %s20
          %s156 = ssub.s32 1024, 1024
          %157 = vsyncadd %s150, %s156
          %s158 = smul.addr %s154, 8
          %s159 = sadd.s32 %s21, %s158
          %s160 = smul.addr %s159, 128
          %s161 = scalar_lea.hbm %s0, %s160
          %s162 = sshll.u32 %s153, 4
          %s163 = int_to_ptr.vmem [resolvable:$true] %s162
          %168 = dma.hbm_to_vmem [thread:$0]  %s161, 1024, %s163, %s150, 256, 128, 8
        $region28: #{tpu_custom_call.1} parent=23 // pred_fallthru
          _
      $region24: #{tpu_custom_call.1} parent=5 // pred_fallthru
        _
      %p169 = scmp.le.s32.totalorder 1, %s13
      %p170 = scmp.lt.s32.totalorder %s13, 3
      %p171 = pnand %p169, %p170
      %p172 = pneg %p171
      // Predicated region
      $region29: #{tpu_custom_call.1} parent=5 // pred_check
        _
      $region30: #{tpu_custom_call.1} parent=5 // pred_check_branch
        %174 = sbr.rel (%p171) target = $region32
      $region31: #{tpu_custom_call.1} parent=5 // pred_region
        %s175 = ssub.s32 %s13, 1
        %s176 = sand.u32 %s40, 1
        %s177 = scalar_lea.sflag [#allocation5], %s176
        %s178 = sand.u32 %s40, 1
        %s179 = smul.addr %s178, 64
        %s180 = scalar_lea.vmem [#allocation4], %s179
        // Predicated region
        $region33: #{tpu_custom_call.1} parent=31 // pred_check
          %p181 = pneg %p53
        $region34: #{tpu_custom_call.1} parent=31 // pred_check_branch
          %183 = sbr.rel (%p181) target = $region36
        $region35: #{tpu_custom_call.1} parent=31 // pred_region
          %184 = dma.done %s177, 1024
        $region36: #{tpu_custom_call.1} parent=31 // pred_fallthru
          _
        %s185 = sand.u32 %s40, 1
        %s186 = scalar_lea.sflag [#allocation5], %s185
        %s187 = sand.u32 %s40, 1
        %s188 = smul.addr %s187, 64
        %s189 = scalar_lea.vmem [#allocation4], %s188
        %p190 = pneg %p53
        %p191 = pneg %p50
        %p192 = pneg %p74
        %p193 = pneg %p71
        %p194 = pneg %p95
        %p195 = pneg %p92
        %p196 = pneg %p121
        %p197 = pneg %p118
        %s198 = smul.u32 2, %s22
        %p199 = scmp.eq.s32.totalorder %s23, 0
        // Predicated region
        $region37: #{tpu_custom_call.1} parent=31 // pred_check
          %p200 = pneg %p199
        $region38: #{tpu_custom_call.1} parent=31 // pred_check_branch
          %202 = sbr.rel (%p200) target = $region40
        $region39: #{tpu_custom_call.1} parent=31 // pred_region
          %vm203 = vcmask 254976
          %204 = vst.msk [vmem:[#allocation2] sm:$0x3] %vm203, 0.0
          %205 = vst.msk [vmem:[#allocation3] sm:$0x3] %vm203, -inf
        $region40: #{tpu_custom_call.1} parent=31 // pred_fallthru
          _
        %v206 = vld [vmem:[%s180] sm:$0xff]
        %v207 = vld [vmem:[%s180 + $0x8] sm:$0xff]
        %v208 = vld [vmem:[%s180 + $0x10] sm:$0xff]
        %v209 = vld [vmem:[%s180 + $0x18] sm:$0xff]
        %v210 = vld [vmem:[%s180 + $0x20] sm:$0xff]
        %v211 = vld [vmem:[%s180 + $0x28] sm:$0xff]
        %v212 = vld [vmem:[%s180 + $0x30] sm:$0xff]
        %v213 = vld [vmem:[%s180 + $0x38] sm:$0xff]
        %214 = vadd.xlane.f32.xlu0 %v206
        %v215 = vpop.xlane.xlu0 %214
        %216 = vadd.xlane.f32.xlu0 %v207
        %v217 = vpop.xlane.xlu0 %216
        %218 = vadd.xlane.f32.xlu0 %v208
        %v219 = vpop.xlane.xlu0 %218
        %220 = vadd.xlane.f32.xlu0 %v209
        %v221 = vpop.xlane.xlu0 %220
        %222 = vadd.xlane.f32.xlu0 %v210
        %v223 = vpop.xlane.xlu0 %222
        %224 = vadd.xlane.f32.xlu0 %v211
        %v225 = vpop.xlane.xlu0 %224
        %226 = vadd.xlane.f32.xlu0 %v212
        %v227 = vpop.xlane.xlu0 %226
        %228 = vadd.xlane.f32.xlu0 %v213
        %v229 = vpop.xlane.xlu0 %228
        %v230 = vadd.f32 %v215, 0.0
        %v231 = vadd.f32 %v217, 0.0
        %v232 = vadd.f32 %v219, 0.0
        %v233 = vadd.f32 %v221, 0.0
        %v234 = vadd.f32 %v223, 0.0
        %v235 = vadd.f32 %v225, 0.0
        %v236 = vadd.f32 %v227, 0.0
        %v237 = vadd.f32 %v229, 0.0
        %238 = vmax.xlane.f32.xlu0 %v206
        %v239 = vpop.xlane.xlu0 %238
        %240 = vmax.xlane.f32.xlu0 %v207
        %v241 = vpop.xlane.xlu0 %240
        %242 = vmax.xlane.f32.xlu0 %v208
        %v243 = vpop.xlane.xlu0 %242
        %244 = vmax.xlane.f32.xlu0 %v209
        %v245 = vpop.xlane.xlu0 %244
        %246 = vmax.xlane.f32.xlu0 %v210
        %v247 = vpop.xlane.xlu0 %246
        %248 = vmax.xlane.f32.xlu0 %v211
        %v249 = vpop.xlane.xlu0 %248
        %250 = vmax.xlane.f32.xlu0 %v212
        %v251 = vpop.xlane.xlu0 %250
        %252 = vmax.xlane.f32.xlu0 %v213
        %v253 = vpop.xlane.xlu0 %252
        %v254 = vld [vmem:[#allocation2] sm:$0x3]
        %v263 = vlaneseq
        %v264 = vand.u32 %v263, 127
        %v265 = vlaneseq
        %v266 = vshrl.u32 %v265, 7
        %v267 = vsub.s32 %v264, %v266
        %v268 = vrot.slane %v230, %v267
        %v269 = vadd.s32 %v264, 4294967288
        %v270 = vlaneseq
        %v271 = vshrl.u32 %v270, 7
        %v272 = vsub.s32 %v269, %v271
        %v273 = vrot.slane %v231, %v272
        %vm274 = vcmask 130112
        %v275 = vsel %vm274, %v273, %v268
        %v276 = vadd.s32 %v264, 4294967280
        %v277 = vlaneseq
        %v278 = vshrl.u32 %v277, 7
        %v279 = vsub.s32 %v276, %v278
        %v280 = vrot.slane %v232, %v279
        %vm281 = vcmask 195712
        %v282 = vsel %vm281, %v280, %v275
        %v283 = vadd.s32 %v264, 4294967272
        %v284 = vlaneseq
        %v285 = vshrl.u32 %v284, 7
        %v286 = vsub.s32 %v283, %v285
        %v287 = vrot.slane %v233, %v286
        %vm288 = vcmask 261312
        %v289 = vsel %vm288, %v287, %v282
        %v290 = vlaneseq
        %v291 = vshrl.u32 %v290, 7
        %v292 = vsub.s32 %v264, %v291
        %v293 = vrot.slane %v234, %v292
        %v294 = vlaneseq
        %v295 = vshrl.u32 %v294, 7
        %v296 = vsub.s32 %v269, %v295
        %v297 = vrot.slane %v235, %v296
        %v298 = vsel %vm274, %v297, %v293
        %v299 = vlaneseq
        %v300 = vshrl.u32 %v299, 7
        %v301 = vsub.s32 %v276, %v300
        %v302 = vrot.slane %v236, %v301
        %v303 = vsel %vm281, %v302, %v298
        %v304 = vlaneseq
        %v305 = vshrl.u32 %v304, 7
        %v306 = vsub.s32 %v283, %v305
        %v307 = vrot.slane %v237, %v306
        %v308 = vsel %vm288, %v307, %v303
        %vm309 = vcmask 1041409
        %v310 = vsel %vm309, %v308, %v289
        %v312 = vadd.f32 %v254, %v310
        %vm313 = vcmask 254976
        %314 = vst.msk [vmem:[#allocation2] sm:$0x3] %vm313, %v312
        %v315 = vld [vmem:[#allocation3] sm:$0x3]
        %v324 = vlaneseq
        %v325 = vshrl.u32 %v324, 7
        %v326 = vsub.s32 %v264, %v325
        %v327 = vrot.slane %v239, %v326
        %v328 = vlaneseq
        %v329 = vshrl.u32 %v328, 7
        %v330 = vsub.s32 %v269, %v329
        %v331 = vrot.slane %v241, %v330
        %v332 = vsel %vm274, %v331, %v327
        %v333 = vlaneseq
        %v334 = vshrl.u32 %v333, 7
        %v335 = vsub.s32 %v276, %v334
        %v336 = vrot.slane %v243, %v335
        %v337 = vsel %vm281, %v336, %v332
        %v338 = vlaneseq
        %v339 = vshrl.u32 %v338, 7
        %v340 = vsub.s32 %v283, %v339
        %v341 = vrot.slane %v245, %v340
        %v342 = vsel %vm288, %v341, %v337
        %v343 = vlaneseq
        %v344 = vshrl.u32 %v343, 7
        %v345 = vsub.s32 %v264, %v344
        %v346 = vrot.slane %v247, %v345
        %v347 = vlaneseq
        %v348 = vshrl.u32 %v347, 7
        %v349 = vsub.s32 %v269, %v348
        %v350 = vrot.slane %v249, %v349
        %v351 = vsel %vm274, %v350, %v346
        %v352 = vlaneseq
        %v353 = vshrl.u32 %v352, 7
        %v354 = vsub.s32 %v276, %v353
        %v355 = vrot.slane %v251, %v354
        %v356 = vsel %vm281, %v355, %v351
        %v357 = vlaneseq
        %v358 = vshrl.u32 %v357, 7
        %v359 = vsub.s32 %v283, %v358
        %v360 = vrot.slane %v253, %v359
        %v361 = vsel %vm288, %v360, %v356
        %v362 = vsel %vm309, %v361, %v342
        %v364 = vmax.f32 %v315, %v362
        %365 = vst.msk [vmem:[#allocation3] sm:$0x3] %vm313, %v364
        %p366 = scmp.eq.s32.totalorder %s23, 1
        // Predicated region
        $region41: #{tpu_custom_call.1} parent=31 // pred_check
          %p367 = pneg %p366
        $region42: #{tpu_custom_call.1} parent=31 // pred_check_branch
          %369 = sbr.rel (%p367) target = $region44
        $region43: #{tpu_custom_call.1} parent=31 // pred_region
          %v370 = vld [vmem:[#allocation2] sm:$0x3]
          %v371 = vmul.f32 %v370, 0.00390625
          %v372 = vld [vmem:[#allocation3] sm:$0x3]
          %v374 = vrot.slane %v372, 6
          %vm376 = vcmask 1041408
          %v377 = vsel %vm376, %v371, %v374
          %v378 = vld [vmem:[%s1] sm:$0xf]
          %vm379 = vcmask 261120
          %v381 = vsel %vm379, %v377, 0
          %v384 = vsel %vm379, %v378, 0
          %386 = vmatprep.subr.mxu0 0.0
          %387 = vmatpush1.xpose.msra.mxu0 0.0
          %388 = vmatprep.subr.mxu0 0.0
          %389 = vmatpush1.xpose.msra.mxu0 0.0
          %390 = vmatprep.subr.mxu0 0.0
          %391 = vmatpush1.xpose.msra.mxu0 0.0
          %392 = vmatprep.subr.mxu0 0.0
          %393 = vmatpush1.xpose.msra.mxu0 0.0
          %394 = vmatprep.subr.mxu0 0.0
          %395 = vmatpush1.xpose.msra.mxu0 0.0
          %396 = vmatprep.subr.mxu0 0.0
          %397 = vmatpush1.xpose.msra.mxu0 0.0
          %398 = vmatprep.subr.mxu0 0.0
          %399 = vmatpush1.xpose.msra.mxu0 0.0
          %400 = vmatprep.subr.mxu0 0.0
          %401 = vmatpush1.xpose.msra.mxu0 0.0
          %402 = vmatprep.subr.mxu0 0.0
          %403 = vmatpush1.xpose.msra.mxu0 0.0
          %404 = vmatprep.subr.mxu0 0.0
          %405 = vmatpush1.xpose.msra.mxu0 0.0
          %406 = vmatprep.subr.mxu0 0.0
          %407 = vmatpush1.xpose.msra.mxu0 0.0
          %408 = vmatprep.subr.mxu0 0.0
          %409 = vmatpush1.xpose.msra.mxu0 0.0
          %410 = vmatprep.subr.mxu0 0.0
          %411 = vmatpush1.xpose.msra.mxu0 0.0
          %412 = vmatprep.subr.mxu0 0.0
          %413 = vmatpush1.xpose.msra.mxu0 0.0
          %414 = vmatprep.subr.mxu0 0.0
          %415 = vmatpush1.xpose.msra.mxu0 0.0
          %416 = vmatprep.subr.mxu0 0.0
          %417 = vmatpush1.xpose.msra.mxu0 %v384
          %418 = vmatprep.subr.mxu0 0.0
          %419 = vmatpush2.xpose.msra.mxu0 0.0
          %420 = vmatprep.subr.mxu0 0.0
          %421 = vmatpush2.xpose.msra.mxu0 0.0
          %422 = vmatprep.subr.mxu0 0.0
          %423 = vmatpush2.xpose.msra.mxu0 0.0
          %424 = vmatprep.subr.mxu0 0.0
          %425 = vmatpush2.xpose.msra.mxu0 0.0
          %426 = vmatprep.subr.mxu0 0.0
          %427 = vmatpush2.xpose.msra.mxu0 0.0
          %428 = vmatprep.subr.mxu0 0.0
          %429 = vmatpush2.xpose.msra.mxu0 0.0
          %430 = vmatprep.subr.mxu0 0.0
          %431 = vmatpush2.xpose.msra.mxu0 0.0
          %432 = vmatprep.subr.mxu0 0.0
          %433 = vmatpush2.xpose.msra.mxu0 0.0
          %434 = vmatprep.subr.mxu0 0.0
          %435 = vmatpush2.xpose.msra.mxu0 0.0
          %436 = vmatprep.subr.mxu0 0.0
          %437 = vmatpush2.xpose.msra.mxu0 0.0
          %438 = vmatprep.subr.mxu0 0.0
          %439 = vmatpush2.xpose.msra.mxu0 0.0
          %440 = vmatprep.subr.mxu0 0.0
          %441 = vmatpush2.xpose.msra.mxu0 0.0
          %442 = vmatprep.subr.mxu0 0.0
          %443 = vmatpush2.xpose.msra.mxu0 0.0
          %444 = vmatprep.subr.mxu0 0.0
          %445 = vmatpush2.xpose.msra.mxu0 0.0
          %446 = vmatprep.subr.mxu0 0.0
          %447 = vmatpush2.xpose.msra.mxu0 0.0
          %448 = vmatprep.subr.mxu0 0.0
          %449 = vmatpush2.xpose.msra.mxu0 0.0
          %450 = vmatprep.mubr.f32.mxu0 0.0
          %451 = vmatmul.mubr.f32.gmra.mxu0 %v381
          %v452 = vpop.f32.mrf.mxu0
          %v453 = vadd.f32 0.0, %v452
          %v454 = vpop.f32.mrf.mxu0
          %455 = vdwg.mxu0
          %v456 = vmax.f32 %v453, 0.0
          %v457 = vld [vmem:[%s2] sm:$0xff]
          %v458 = vld [vmem:[%s2 + $0x8] sm:$0xff]
          %v459 = vld [vmem:[%s2 + $0x10] sm:$0xff]
          %v460 = vld [vmem:[%s2 + $0x18] sm:$0xff]
          %vm461 = vcmask 31744
          %v463 = vsel %vm461, %v456, 0
          %v466 = vsel %vm461, %v457, 0
          %v469 = vsel %vm461, %v458, 0
          %v472 = vsel %vm461, %v459, 0
          %v475 = vsel %vm461, %v460, 0
          %477 = vmatprep.subr.mxu0 0.0
          %478 = vmatpush1.xpose.msra.mxu0 0.0
          %479 = vmatprep.subr.mxu0 0.0
          %480 = vmatpush1.xpose.msra.mxu0 0.0
          %481 = vmatprep.subr.mxu0 0.0
          %482 = vmatpush1.xpose.msra.mxu0 0.0
          %483 = vmatprep.subr.mxu0 0.0
          %484 = vmatpush1.xpose.msra.mxu0 0.0
          %485 = vmatprep.subr.mxu0 0.0
          %486 = vmatpush1.xpose.msra.mxu0 0.0
          %487 = vmatprep.subr.mxu0 0.0
          %488 = vmatpush1.xpose.msra.mxu0 0.0
          %489 = vmatprep.subr.mxu0 0.0
          %490 = vmatpush1.xpose.msra.mxu0 0.0
          %491 = vmatprep.subr.mxu0 0.0
          %492 = vmatpush1.xpose.msra.mxu0 0.0
          %493 = vmatprep.subr.mxu0 0.0
          %494 = vmatpush1.xpose.msra.mxu0 0.0
          %495 = vmatprep.subr.mxu0 0.0
          %496 = vmatpush1.xpose.msra.mxu0 0.0
          %497 = vmatprep.subr.mxu0 0.0
          %498 = vmatpush1.xpose.msra.mxu0 0.0
          %499 = vmatprep.subr.mxu0 0.0
          %500 = vmatpush1.xpose.msra.mxu0 0.0
          %501 = vmatprep.subr.mxu0 0.0
          %502 = vmatpush1.xpose.msra.mxu0 %v475
          %503 = vmatprep.subr.mxu0 0.0
          %504 = vmatpush1.xpose.msra.mxu0 %v472
          %505 = vmatprep.subr.mxu0 0.0
          %506 = vmatpush1.xpose.msra.mxu0 %v469
          %507 = vmatprep.subr.mxu0 0.0
          %508 = vmatpush1.xpose.msra.mxu0 %v466
          %509 = vmatprep.subr.mxu0 0.0
          %510 = vmatpush2.xpose.msra.mxu0 0.0
          %511 = vmatprep.subr.mxu0 0.0
          %512 = vmatpush2.xpose.msra.mxu0 0.0
          %513 = vmatprep.subr.mxu0 0.0
          %514 = vmatpush2.xpose.msra.mxu0 0.0
          %515 = vmatprep.subr.mxu0 0.0
          %516 = vmatpush2.xpose.msra.mxu0 0.0
          %517 = vmatprep.subr.mxu0 0.0
          %518 = vmatpush2.xpose.msra.mxu0 0.0
          %519 = vmatprep.subr.mxu0 0.0
          %520 = vmatpush2.xpose.msra.mxu0 0.0
          %521 = vmatprep.subr.mxu0 0.0
          %522 = vmatpush2.xpose.msra.mxu0 0.0
          %523 = vmatprep.subr.mxu0 0.0
          %524 = vmatpush2.xpose.msra.mxu0 0.0
          %525 = vmatprep.subr.mxu0 0.0
          %526 = vmatpush2.xpose.msra.mxu0 0.0
          %527 = vmatprep.subr.mxu0 0.0
          %528 = vmatpush2.xpose.msra.mxu0 0.0
          %529 = vmatprep.subr.mxu0 0.0
          %530 = vmatpush2.xpose.msra.mxu0 0.0
          %531 = vmatprep.subr.mxu0 0.0
          %532 = vmatpush2.xpose.msra.mxu0 0.0
          %533 = vmatprep.subr.mxu0 0.0
          %534 = vmatpush2.xpose.msra.mxu0 0.0
          %535 = vmatprep.subr.mxu0 0.0
          %536 = vmatpush2.xpose.msra.mxu0 0.0
          %537 = vmatprep.subr.mxu0 0.0
          %538 = vmatpush2.xpose.msra.mxu0 0.0
          %539 = vmatprep.subr.mxu0 0.0
          %540 = vmatpush2.xpose.msra.mxu0 0.0
          %541 = vmatprep.mubr.f32.mxu0 0.0
          %542 = vmatmul.mubr.f32.gmra.mxu0 %v463
          %v543 = vpop.f32.mrf.mxu0
          %v544 = vadd.f32 0.0, %v543
          %v545 = vpop.f32.mrf.mxu0
          %546 = vdwg.mxu0
          %v548 = vrot.slane %v544, 2
          %v550 = vadd.f32 %v544, %v548
          %v551 = vxor.u32 %v550, 2147483648
          %v552 = vmul.f32 %v551, 1.442695
          %v553 = vpow.pop %v552
          %v554 = vadd.f32 %v553, 1.0
          %v555 = vrcp.pop %v554
          %v556 = vmul.f32 1.0, %v555
          %557 = vst.msk [vmem:[#allocation7] sm:$0x3] %vm313, %v556
        $region44: #{tpu_custom_call.1} parent=31 // pred_fallthru
          _
        // Predicated region
        $region45: #{tpu_custom_call.1} parent=31 // pred_check
          %p558 = pneg %p118
        $region46: #{tpu_custom_call.1} parent=31 // pred_check_branch
          %560 = sbr.rel (%p558) target = $region48
        $region47: #{tpu_custom_call.1} parent=31 // pred_region
          %s562 = ssub.s32 32, 32
          %563 = vsyncadd [#allocation6], %s562
          %s564 = smul.addr %s22, 32
          %s565 = scalar_lea.hbm %s3, %s564
          %s567 = sshll.u32 [#allocation7], 4
          %s568 = int_to_ptr.vmem [resolvable:$true] %s567
          %570 = dma.vmem_to_hbm [thread:$0]  %s568, 32, %s565, [#allocation6]
        $region48: #{tpu_custom_call.1} parent=31 // pred_fallthru
          _
        // Predicated region
        $region49: #{tpu_custom_call.1} parent=31 // pred_check
          %p571 = pneg %p118
        $region50: #{tpu_custom_call.1} parent=31 // pred_check_branch
          %573 = sbr.rel (%p571) target = $region52
        $region51: #{tpu_custom_call.1} parent=31 // pred_region
          %574 = dma.done [#allocation6], 32
        $region52: #{tpu_custom_call.1} parent=31 // pred_fallthru
          _
      $region32: #{tpu_custom_call.1} parent=5 // pred_fallthru
        _
      %p575 = scmp.le.s32.totalorder 2, %s13
      // Predicated region
      $region53: #{tpu_custom_call.1} parent=5 // pred_check
        %p576 = pneg %p575
      $region54: #{tpu_custom_call.1} parent=5 // pred_check_branch
        %578 = sbr.rel (%p576) target = $region56
      $region55: #{tpu_custom_call.1} parent=5 // pred_region
        %s579 = ssub.s32 %s13, 2
      $region56: #{tpu_custom_call.1} parent=5 // pred_fallthru
        _
    $region6: #{tpu_custom_call.1} parent=1 // loop_footer
      %s17 = sadd.s32 1, %s13
    $region7: #{tpu_custom_call.1} parent=1 // loop_footer_branch
      %12 = sbr.rel target = $region3
    $region8: #{tpu_custom_call.1} parent=1 // loop_exit
      _
    %580 = vsyncpa [#allocation5], 1
    %s581 = scalar_lea.sflag [#allocation5], 1
    %582 = vsyncpa %s581, 1
    %583 = vsyncpa [#allocation6], 1
    %s584 = scalar_lea.sflag [#allocation6], 1
    %585 = vsyncpa %s584, 1

</llo_original>
